<compile_context>
chip_gen: v7x
topology: tpu7x:2x2x1
jax: 0.10.0
libtpu: 0.0.40
codegen_flags: <defaults>
</compile_context>

<pallas_src>
import jax
import jax.numpy as jnp
from jax.experimental import pallas as pl
from jax.experimental.pallas import tpu as pltpu

H1, H2, OUT = 40, 120, 2              # logical layer widths (PyTorch DQN)
H1_PAD, H2_PAD, OUT_PAD = 128, 128, 128
LANE, SUBLANE = 128, 8


def _round_up(n, m):
    return ((n + m - 1) // m) * m


def _pick_tile(B, tile_b):
    """Batch tile: multiple of 8 sublanes, >=2 grid steps when B is large enough (v7x megacore)."""
    if B < 2 * SUBLANE:
        return B                                     # single tiny block == full array dim
    tb = min(tile_b, _round_up(B, SUBLANE))
    if pl.cdiv(B, tb) < 2:                           # guarantee >=2 grid steps
        tb = _round_up(pl.cdiv(B, 2), SUBLANE)
    return tb


def dqn_kernel(x_ref, w1_ref, b1_ref, w2_ref, b2_ref, w3_ref, b3_ref, o_ref):
    # f32 input tile, cast to bf16 only as MXU operand; f32 accumulation; f32 epilogue on VPU.
    x = x_ref[...].astype(jnp.bfloat16)                                   # (TB, K)
    h1 = jnp.dot(x, w1_ref[...], preferred_element_type=jnp.float32) + b1_ref[...]
    h1 = jnp.maximum(h1, 0.0)
    h2 = jnp.dot(h1.astype(jnp.bfloat16), w2_ref[...],
                 preferred_element_type=jnp.float32) + b2_ref[...]
    h2 = jnp.maximum(h2, 0.0)
    q = jnp.dot(h2.astype(jnp.bfloat16), w3_ref[...],
                preferred_element_type=jnp.float32) + b3_ref[...]
    o_ref[...] = q.astype(o_ref.dtype)                                    # bf16 lane-dense store


def dqn_forward(x_img, params, *, tile_b=1024):
    """x_img: (B, 3, H, W) float32. params: from prepare_params. Returns (B, 2) float32 Q-values."""
    B = x_img.shape[0]
    x = x_img.reshape(B, -1)                     # torch-style flatten(start_dim=1); no copy, stays f32
    K = x.shape[1]

    w1, b1, w2, b2, w3, b3 = params
    assert w1.shape[0] == K, "w1 must be unpadded along K to match the unpadded input"

    TB = _pick_tile(B, tile_b)
    grid = (pl.cdiv(B, TB),)                     # ragged last block is masked; no batch padding

    resident = lambda a: pl.BlockSpec(a.shape, lambda i: (0,) * a.ndim)   # weights VMEM-resident

    flops = 2 * B * (K * H1_PAD + H1_PAD * H2_PAD + H2_PAD * OUT_PAD)
    bytes_accessed = (x.size * 4
                      + (w1.size + w2.size + w3.size) * 2
                      + (b1.size + b2.size + b3.size) * 4
                      + B * OUT_PAD * 2)

    out = pl.pallas_call(
        dqn_kernel,
        out_shape=jax.ShapeDtypeStruct((B, OUT_PAD), jnp.bfloat16),
        grid=grid,
        in_specs=[
            pl.BlockSpec((TB, K), lambda i: (i, 0)),   # pipelined f32 input tiles (last dim == full K)
            resident(w1), resident(b1),
            resident(w2), resident(b2),
            resident(w3), resident(b3),
        ],
        out_specs=pl.BlockSpec((TB, OUT_PAD), lambda i: (i, 0)),
        compiler_params=pltpu.CompilerParams(
            dimension_semantics=("parallel",),          # megacore sharding of the batch axis on v7x
            vmem_limit_bytes=32 * 1024 * 1024,
        ),
        cost_estimate=pl.CostEstimate(
            flops=flops, transcendentals=0, bytes_accessed=bytes_accessed),
    )(x, w1, b1, w2, b2, w3, b3)

    return out[:, :OUT].astype(jnp.float32)


def init_params(key, in_features, h1=H1, h2=H2, out=OUT):
    """f32, unpadded, PyTorch-Linear-style init. Weights stored (in, out) so kernel does x @ W + b."""
    ks = jax.random.split(key, 6)

    def lin(kw, kb, fan_in, fan_out):
        bound = 1.0 / (fan_in ** 0.5)
        w = jax.random.uniform(kw, (fan_in, fan_out), jnp.float32, -bound, bound)
        b = jax.random.uniform(kb, (1, fan_out), jnp.float32, -bound, bound)
        return w, b

    w1, b1 = lin(ks[0], ks[1], in_features, h1)
    w2, b2 = lin(ks[2], ks[3], h1, h2)
    w3, b3 = lin(ks[4], ks[5], h2, out)
    return (w1, b1, w2, b2, w3, b3)


def prepare_params(params):
    """Pad output feature dims to 128 lanes (zeros); w1's K dim stays unpadded to match raw x.
    Weights in bf16 (MXU operands), biases in f32 (VPU epilogue)."""
    w1, b1, w2, b2, w3, b3 = params
    K = w1.shape[0]

    def pad(a, rows, cols, dtype):
        buf = jnp.zeros((rows, cols), dtype)
        return buf.at[: a.shape[0], : a.shape[1]].set(a.astype(dtype))

    return (
        pad(w1, K, H1_PAD, jnp.bfloat16),        pad(b1, 1, H1_PAD, jnp.float32),
        pad(w2, H1_PAD, H2_PAD, jnp.bfloat16),   pad(b2, 1, H2_PAD, jnp.float32),
        pad(w3, H2_PAD, OUT_PAD, jnp.bfloat16),  pad(b3, 1, OUT_PAD, jnp.float32),
    )


if __name__ == "__main__":
    key = jax.random.PRNGKey(0)
    k_x, k_p = jax.random.split(key)

    B, C, H, W = 2, 3, 16, 16                 # DQN expects a 3-channel image of the cart
    x = jax.random.uniform(k_x, (B, C, H, W), jnp.float32)

    in_features = C * H * W
    params_f32 = init_params(k_p, in_features)
    params = prepare_params(params_f32)

    q_values = dqn_forward(x, params)
    jax.block_until_ready(q_values)

    # f32 reference (kernel uses bf16 MXU operands + bf16 output store -> loose tolerance)
    xf = x.reshape(B, -1)
    w1, b1, w2, b2, w3, b3 = params_f32
    ref = jnp.maximum(xf @ w1 + b1, 0.0)
    ref = jnp.maximum(ref @ w2 + b2, 0.0)
    ref = ref @ w3 + b3

    assert q_values.shape == (B, OUT)
    assert jnp.allclose(q_values, ref, atol=5e-2, rtol=5e-2), (
        f"max abs diff = {jnp.max(jnp.abs(q_values - ref))}")

    print("KERNEL_OK")
</pallas_src>

<mosaic_0001>
module attributes {stable_mosaic.version = 11 : i64} {
  func.func @dqn_kernel(%arg0: i32, %arg1: memref<2x768xf32, #tpu.memory_space<vmem>>, %arg2: memref<768x128xbf16, #tpu.memory_space<vmem>>, %arg3: memref<1x128xf32, #tpu.memory_space<vmem>>, %arg4: memref<128x128xbf16, #tpu.memory_space<vmem>>, %arg5: memref<1x128xf32, #tpu.memory_space<vmem>>, %arg6: memref<128x128xbf16, #tpu.memory_space<vmem>>, %arg7: memref<1x128xf32, #tpu.memory_space<vmem>>, %arg8: memref<2x128xbf16, #tpu.memory_space<vmem>>) attributes {dimension_semantics = [#tpu.dimension_semantics<parallel>], iteration_bounds = array<i64: 1>, scalar_prefetch = 0 : i64, scratch_operands = 0 : i64, tpu.core_type = #tpu.core_type<tc>, window_params = [{transform_indices = @transform_0, window_bounds = array<i64: 2, 768>}, {pipeline_mode = #tpu.pipeline_mode<synchronous>, transform_indices = @transform_1, window_bounds = array<i64: 768, 128>}, {pipeline_mode = #tpu.pipeline_mode<synchronous>, transform_indices = @transform_2, window_bounds = array<i64: 1, 128>}, {pipeline_mode = #tpu.pipeline_mode<synchronous>, transform_indices = @transform_3, window_bounds = array<i64: 128, 128>}, {pipeline_mode = #tpu.pipeline_mode<synchronous>, transform_indices = @transform_4, window_bounds = array<i64: 1, 128>}, {pipeline_mode = #tpu.pipeline_mode<synchronous>, transform_indices = @transform_5, window_bounds = array<i64: 128, 128>}, {pipeline_mode = #tpu.pipeline_mode<synchronous>, transform_indices = @transform_6, window_bounds = array<i64: 1, 128>}, {transform_indices = @transform_7, window_bounds = array<i64: 2, 128>}]} {
    %c0 = arith.constant 0 : index
    %c0_0 = arith.constant 0 : index
    %0 = vector.load %arg1[%c0, %c0_0] : memref<2x768xf32, #tpu.memory_space<vmem>>, vector<2x768xf32>
    %1 = arith.truncf %0 : vector<2x768xf32> to vector<2x768xbf16>
    %c0_1 = arith.constant 0 : index
    %c0_2 = arith.constant 0 : index
    %2 = vector.load %arg2[%c0_1, %c0_2] : memref<768x128xbf16, #tpu.memory_space<vmem>>, vector<768x128xbf16>
    %cst = arith.constant dense<0.000000e+00> : vector<2x128xf32>
    %3 = tpu.matmul %1, %2, %cst {dimension_numbers = #tpu.dot_dimension_numbers<[1], [0], [0], [1], [0, 0, 1, 1], [], []>} : vector<2x768xbf16>, vector<768x128xbf16>, vector<2x128xf32> -> vector<2x128xf32>
    %c0_3 = arith.constant 0 : index
    %c0_4 = arith.constant 0 : index
    %4 = vector.load %arg3[%c0_3, %c0_4] : memref<1x128xf32, #tpu.memory_space<vmem>>, vector<1x128xf32>
    %5 = vector.broadcast %4 : vector<1x128xf32> to vector<2x128xf32>
    %6 = arith.addf %3, %5 : vector<2x128xf32>
    %cst_5 = arith.constant 0.000000e+00 : f32
    %7 = vector.broadcast %cst_5 : f32 to vector<2x128xf32>
    %8 = arith.maximumf %6, %7 : vector<2x128xf32>
    %9 = arith.truncf %8 : vector<2x128xf32> to vector<2x128xbf16>
    %c0_6 = arith.constant 0 : index
    %c0_7 = arith.constant 0 : index
    %10 = vector.load %arg4[%c0_6, %c0_7] : memref<128x128xbf16, #tpu.memory_space<vmem>>, vector<128x128xbf16>
    %cst_8 = arith.constant dense<0.000000e+00> : vector<2x128xf32>
    %11 = tpu.matmul %9, %10, %cst_8 {dimension_numbers = #tpu.dot_dimension_numbers<[1], [0], [0], [1], [0, 0, 1, 1], [], []>} : vector<2x128xbf16>, vector<128x128xbf16>, vector<2x128xf32> -> vector<2x128xf32>
    %c0_9 = arith.constant 0 : index
    %c0_10 = arith.constant 0 : index
    %12 = vector.load %arg5[%c0_9, %c0_10] : memref<1x128xf32, #tpu.memory_space<vmem>>, vector<1x128xf32>
    %13 = vector.broadcast %12 : vector<1x128xf32> to vector<2x128xf32>
    %14 = arith.addf %11, %13 : vector<2x128xf32>
    %cst_11 = arith.constant 0.000000e+00 : f32
    %15 = vector.broadcast %cst_11 : f32 to vector<2x128xf32>
    %16 = arith.maximumf %14, %15 : vector<2x128xf32>
    %17 = arith.truncf %16 : vector<2x128xf32> to vector<2x128xbf16>
    %c0_12 = arith.constant 0 : index
    %c0_13 = arith.constant 0 : index
    %18 = vector.load %arg6[%c0_12, %c0_13] : memref<128x128xbf16, #tpu.memory_space<vmem>>, vector<128x128xbf16>
    %cst_14 = arith.constant dense<0.000000e+00> : vector<2x128xf32>
    %19 = tpu.matmul %17, %18, %cst_14 {dimension_numbers = #tpu.dot_dimension_numbers<[1], [0], [0], [1], [0, 0, 1, 1], [], []>} : vector<2x128xbf16>, vector<128x128xbf16>, vector<2x128xf32> -> vector<2x128xf32>
    %c0_15 = arith.constant 0 : index
    %c0_16 = arith.constant 0 : index
    %20 = vector.load %arg7[%c0_15, %c0_16] : memref<1x128xf32, #tpu.memory_space<vmem>>, vector<1x128xf32>
    %21 = vector.broadcast %20 : vector<1x128xf32> to vector<2x128xf32>
    %22 = arith.addf %19, %21 : vector<2x128xf32>
    %23 = arith.truncf %22 : vector<2x128xf32> to vector<2x128xbf16>
    %c0_17 = arith.constant 0 : index
    %c0_18 = arith.constant 0 : index
    %24 = vector.load %arg8[%c0_17, %c0_18] : memref<2x128xbf16, #tpu.memory_space<vmem>>, vector<2x128xbf16>
    tpu.vector_store %arg8[%c0_17, %c0_18], %23 {strides = array<i32>} : memref<2x128xbf16, #tpu.memory_space<vmem>>, vector<2x128xbf16>,
    return
  }
  func.func @transform_0(%arg0: i32) -> (i32, i32) {
    %c0_i32 = arith.constant 0 : i32
    %c0_i32_0 = arith.constant 0 : i32
    return %arg0, %c0_i32 : i32, i32
  }
  func.func @transform_1(%arg0: i32) -> (i32, i32) {
    %c0_i32 = arith.constant 0 : i32
    %c0_i32_0 = arith.constant 0 : i32
    %c0_i32_1 = arith.constant 0 : i32
    return %c0_i32, %c0_i32_0 : i32, i32
  }
  func.func @transform_2(%arg0: i32) -> (i32, i32) {
    %c0_i32 = arith.constant 0 : i32
    %c0_i32_0 = arith.constant 0 : i32
    %c0_i32_1 = arith.constant 0 : i32
    return %c0_i32, %c0_i32_0 : i32, i32
  }
  func.func @transform_3(%arg0: i32) -> (i32, i32) {
    %c0_i32 = arith.constant 0 : i32
    %c0_i32_0 = arith.constant 0 : i32
    %c0_i32_1 = arith.constant 0 : i32
    return %c0_i32, %c0_i32_0 : i32, i32
  }
  func.func @transform_4(%arg0: i32) -> (i32, i32) {
    %c0_i32 = arith.constant 0 : i32
    %c0_i32_0 = arith.constant 0 : i32
    %c0_i32_1 = arith.constant 0 : i32
    return %c0_i32, %c0_i32_0 : i32, i32
  }
  func.func @transform_5(%arg0: i32) -> (i32, i32) {
    %c0_i32 = arith.constant 0 : i32
    %c0_i32_0 = arith.constant 0 : i32
    %c0_i32_1 = arith.constant 0 : i32
    return %c0_i32, %c0_i32_0 : i32, i32
  }
  func.func @transform_6(%arg0: i32) -> (i32, i32) {
    %c0_i32 = arith.constant 0 : i32
    %c0_i32_0 = arith.constant 0 : i32
    %c0_i32_1 = arith.constant 0 : i32
    return %c0_i32, %c0_i32_0 : i32, i32
  }
  func.func @transform_7(%arg0: i32) -> (i32, i32) {
    %c0_i32 = arith.constant 0 : i32
    %c0_i32_0 = arith.constant 0 : i32
    return %arg0, %c0_i32 : i32, i32
  }
}

</mosaic_0001>

<llo_original>
// kernel: tpu_custom_call.1
$region0: #{tpu_custom_call.1}
  #allocation0 [shape = 'u32[]', space=smem, size = 0x4, offset = 0x4, fixed_abs, tag = 'smem constant byte address 0x4 - core index']
  #allocation1 [shape = 'u32[144,128]{1,0:T(1,128)}', space=vmem, size = 0x12000, scoped, tag = 'internal scratch']
  %s0 = inlined_call_operand.hbm [shape: f32[2,768], index: 0, kind: input, shape index: {}]
  %s1 = inlined_call_operand.hbm [shape: bf16[768,128], index: 1, kind: input, shape index: {}]
  %s2 = inlined_call_operand.vmem [shape: f32[1,128], index: 2, kind: input, shape index: {}]
  %s3 = inlined_call_operand.hbm [shape: bf16[128,128], index: 3, kind: input, shape index: {}]
  %s4 = inlined_call_operand.vmem [shape: f32[1,128], index: 4, kind: input, shape index: {}]
  %s5 = inlined_call_operand.hbm [shape: bf16[128,128], index: 5, kind: input, shape index: {}]
  %s6 = inlined_call_operand.vmem [shape: f32[1,128], index: 6, kind: input, shape index: {}]
  %s7 = inlined_call_operand.hbm [shape: bf16[2,128], index: 7, kind: output, shape index: {}]
  %s8 = sld [smem:[#allocation0]]
  $region54: #{tpu_custom_call.1} parent=0
    _
  %s10 = ssub.s32 1, %s8
  %s11 = scalar_select 0, %s10, %s8
  $region1: #{tpu_custom_call.1} parent=0
    #allocation2 [shape = 'u8[6144]{0}', space=vmem, size = 0x1800, scoped, tag = 'input window, operand 0, single buffered']
    #allocation3 [shape = 's32[1]{0}', space=sflag, size = 0x4, scoped, tag = 'scoped memory for tpu_custom_call.1']
    #allocation4 [shape = 's32[1]{0}', space=sflag, size = 0x4, scoped, tag = 'scoped memory for tpu_custom_call.1']
    #allocation5 [shape = 'u8[196608]{0}', space=vmem, size = 0x30000, scoped, tag = 'input window, operand 1, single buffered']
    #allocation6 [shape = 's32[1]{0}', space=sflag, size = 0x4, scoped, tag = 'scoped memory for tpu_custom_call.1']
    #allocation7 [shape = 'u8[32768]{0}', space=vmem, size = 0x8000, scoped, tag = 'input window, operand 3, single buffered']
    #allocation8 [shape = 'u8[32768]{0}', space=vmem, size = 0x8000, scoped, tag = 'input window, operand 5, single buffered']
    #allocation9 [shape = 's32[1]{0}', space=sflag, size = 0x4, scoped, tag = 'scoped memory for tpu_custom_call.1']
    #allocation10 [shape = 'u8[512]{0}', space=vmem, size = 0x400, scoped, tag = 'output window, operand 0, single buffered']
    %12 = vsyncpa [#allocation3], 0
    %13 = vsyncpa [#allocation6], 0
    %14 = vsyncpa [#allocation9], 0
    %15 = vsyncpa [#allocation4], 0
    // Predicated region
    $region2: #{tpu_custom_call.1} parent=1 // pred_check
      _
    $region3: #{tpu_custom_call.1} parent=1 // pred_check_branch
      %17 = sbr.rel (0) target = $region5
    $region4: #{tpu_custom_call.1} parent=1 // pred_region
      %s19 = ssub.s32 192, 192
      %20 = vsyncadd [#allocation3], %s19
      %s22 = sshll.u32 [#allocation2], 4
      %s23 = int_to_ptr.vmem [resolvable:$true] %s22
      %25 = dma.hbm_to_vmem [thread:$0]  %s0, 192, %s23, [#allocation3]
    $region5: #{tpu_custom_call.1} parent=1 // pred_fallthru
      _
    // Predicated region
    $region6: #{tpu_custom_call.1} parent=1 // pred_check
      _
    $region7: #{tpu_custom_call.1} parent=1 // pred_check_branch
      %27 = sbr.rel (0) target = $region9
    $region8: #{tpu_custom_call.1} parent=1 // pred_region
      %s29 = ssub.s32 6144, 6144
      %30 = vsyncadd [#allocation6], %s29
      %s31 = sshll.u32 [#allocation5], 4
      %s32 = int_to_ptr.vmem [resolvable:$true] %s31
      %37 = dma.hbm_to_vmem [thread:$0]  %s1, 6144, %s32, [#allocation6], 64, 64, 4
    $region9: #{tpu_custom_call.1} parent=1 // pred_fallthru
      _
    // Predicated region
    $region10: #{tpu_custom_call.1} parent=1 // pred_check
      _
    $region11: #{tpu_custom_call.1} parent=1 // pred_check_branch
      %39 = sbr.rel (0) target = $region13
    $region12: #{tpu_custom_call.1} parent=1 // pred_region
      _
    $region13: #{tpu_custom_call.1} parent=1 // pred_fallthru
      _
    // Predicated region
    $region14: #{tpu_custom_call.1} parent=1 // pred_check
      _
    $region15: #{tpu_custom_call.1} parent=1 // pred_check_branch
      %41 = sbr.rel (0) target = $region17
    $region16: #{tpu_custom_call.1} parent=1 // pred_region
      %s43 = ssub.s32 1024, 1024
      %44 = vsyncadd [#allocation6], %s43
      %s45 = sshll.u32 [#allocation7], 4
      %s46 = int_to_ptr.vmem [resolvable:$true] %s45
      %51 = dma.hbm_to_vmem [thread:$0]  %s3, 1024, %s46, [#allocation6], 64, 64, 4
    $region17: #{tpu_custom_call.1} parent=1 // pred_fallthru
      _
    // Predicated region
    $region18: #{tpu_custom_call.1} parent=1 // pred_check
      _
    $region19: #{tpu_custom_call.1} parent=1 // pred_check_branch
      %53 = sbr.rel (0) target = $region21
    $region20: #{tpu_custom_call.1} parent=1 // pred_region
      _
    $region21: #{tpu_custom_call.1} parent=1 // pred_fallthru
      _
    // Predicated region
    $region22: #{tpu_custom_call.1} parent=1 // pred_check
      _
    $region23: #{tpu_custom_call.1} parent=1 // pred_check_branch
      %55 = sbr.rel (0) target = $region25
    $region24: #{tpu_custom_call.1} parent=1 // pred_region
      %s57 = ssub.s32 1024, 1024
      %58 = vsyncadd [#allocation9], %s57
      %s59 = sshll.u32 [#allocation8], 4
      %s60 = int_to_ptr.vmem [resolvable:$true] %s59
      %65 = dma.hbm_to_vmem [thread:$0]  %s5, 1024, %s60, [#allocation9], 64, 64, 4
    $region25: #{tpu_custom_call.1} parent=1 // pred_fallthru
      _
    // Predicated region
    $region26: #{tpu_custom_call.1} parent=1 // pred_check
      _
    $region27: #{tpu_custom_call.1} parent=1 // pred_check_branch
      %67 = sbr.rel (0) target = $region29
    $region28: #{tpu_custom_call.1} parent=1 // pred_region
      _
    $region29: #{tpu_custom_call.1} parent=1 // pred_fallthru
      _
    // Predicated region
    $region30: #{tpu_custom_call.1} parent=1 // pred_check
      _
    $region31: #{tpu_custom_call.1} parent=1 // pred_check_branch
      %69 = sbr.rel (0) target = $region33
    $region32: #{tpu_custom_call.1} parent=1 // pred_region
      %70 = dma.done [#allocation3], 192
    $region33: #{tpu_custom_call.1} parent=1 // pred_fallthru
      _
    // Predicated region
    $region34: #{tpu_custom_call.1} parent=1 // pred_check
      _
    $region35: #{tpu_custom_call.1} parent=1 // pred_check_branch
      %72 = sbr.rel (0) target = $region37
    $region36: #{tpu_custom_call.1} parent=1 // pred_region
      %73 = dma.done [#allocation6], 6144
    $region37: #{tpu_custom_call.1} parent=1 // pred_fallthru
      _
    // Predicated region
    $region38: #{tpu_custom_call.1} parent=1 // pred_check
      _
    $region39: #{tpu_custom_call.1} parent=1 // pred_check_branch
      %75 = sbr.rel (0) target = $region41
    $region40: #{tpu_custom_call.1} parent=1 // pred_region
      %76 = dma.done [#allocation6], 1024
    $region41: #{tpu_custom_call.1} parent=1 // pred_fallthru
      _
    // Predicated region
    $region42: #{tpu_custom_call.1} parent=1 // pred_check
      _
    $region43: #{tpu_custom_call.1} parent=1 // pred_check_branch
      %78 = sbr.rel (0) target = $region45
    $region44: #{tpu_custom_call.1} parent=1 // pred_region
      %79 = dma.done [#allocation9], 1024
    $region45: #{tpu_custom_call.1} parent=1 // pred_fallthru
      _
    %v81 = vld [vmem:[#allocation2] sm:$0xff]
    %v82 = vld [vmem:[#allocation2 + $0x8] sm:$0xf]
    %v85 = vcombine.high %v81, %v81
    %v87 = vunpack.c.l.s4 1983009808
    %v88 = vunpack.c.0.s8 %v87
    %v89 = vlaneseq
    %v90 = vshrl.u32 %v89, 7
    %v91 = vsub.s32 %v88, %v90
    %v92 = vrot.slane %v81, %v91
    %v94 = vunpack.c.l.s4 1983009808
    %v95 = vunpack.c.0.s8 %v94
    %v96 = vlaneseq
    %v97 = vshrl.u32 %v96, 7
    %v98 = vsub.s32 %v95, %v97
    %v99 = vrot.slane %v85, %v98
    %v100 = vcombine.high %v92, %v92
    %v101 = vcombine.high %v99, %v99
    %v103 = vunpack.c.l.s4 1983009808
    %v104 = vunpack.c.0.s8 %v103
    %v105 = vlaneseq
    %v106 = vshrl.u32 %v105, 7
    %v107 = vsub.s32 %v104, %v106
    %v108 = vrot.slane %v82, %v107
    %v109 = vcombine.high %v108, %v108
    %v116 = vpack.c.bf16 %v92, %v92
    %v117 = vpack.c.bf16 %v100, %v100
    %v118 = vpack.c.bf16 %v99, %v99
    %v119 = vpack.c.bf16 %v101, %v101
    %v120 = vpack.c.bf16 %v108, %v108
    %v121 = vpack.c.bf16 %v109, %v109
    %v122 = vld [vmem:[#allocation5] sm:$0xf]
    %v123 = vld [vmem:[#allocation5 + $0x4] sm:$0xf]
    %v124 = vld [vmem:[#allocation5 + $0x8] sm:$0xf]
    %v125 = vld [vmem:[#allocation5 + $0xc] sm:$0xf]
    %v126 = vld [vmem:[#allocation5 + $0x10] sm:$0xf]
    %v127 = vld [vmem:[#allocation5 + $0x14] sm:$0xf]
    %v128 = vld [vmem:[#allocation5 + $0x18] sm:$0xf]
    %v129 = vld [vmem:[#allocation5 + $0x1c] sm:$0xf]
    %v130 = vld [vmem:[#allocation5 + $0x20] sm:$0xf]
    %v131 = vld [vmem:[#allocation5 + $0x24] sm:$0xf]
    %v132 = vld [vmem:[#allocation5 + $0x28] sm:$0xf]
    %v133 = vld [vmem:[#allocation5 + $0x2c] sm:$0xf]
    %v134 = vld [vmem:[#allocation5 + $0x30] sm:$0xf]
    %v135 = vld [vmem:[#allocation5 + $0x34] sm:$0xf]
    %v136 = vld [vmem:[#allocation5 + $0x38] sm:$0xf]
    %v137 = vld [vmem:[#allocation5 + $0x3c] sm:$0xf]
    %v138 = vld [vmem:[#allocation5 + $0x40] sm:$0xf]
    %v139 = vld [vmem:[#allocation5 + $0x44] sm:$0xf]
    %v140 = vld [vmem:[#allocation5 + $0x48] sm:$0xf]
    %v141 = vld [vmem:[#allocation5 + $0x4c] sm:$0xf]
    %v142 = vld [vmem:[#allocation5 + $0x50] sm:$0xf]
    %v143 = vld [vmem:[#allocation5 + $0x54] sm:$0xf]
    %v144 = vld [vmem:[#allocation5 + $0x58] sm:$0xf]
    %v145 = vld [vmem:[#allocation5 + $0x5c] sm:$0xf]
    %v146 = vld [vmem:[#allocation5 + $0x60] sm:$0xf]
    %v147 = vld [vmem:[#allocation5 + $0x64] sm:$0xf]
    %v148 = vld [vmem:[#allocation5 + $0x68] sm:$0xf]
    %v149 = vld [vmem:[#allocation5 + $0x6c] sm:$0xf]
    %v150 = vld [vmem:[#allocation5 + $0x70] sm:$0xf]
    %v151 = vld [vmem:[#allocation5 + $0x74] sm:$0xf]
    %v152 = vld [vmem:[#allocation5 + $0x78] sm:$0xf]
    %v153 = vld [vmem:[#allocation5 + $0x7c] sm:$0xf]
    %v154 = vld [vmem:[#allocation5 + $0x80] sm:$0xf]
    %v155 = vld [vmem:[#allocation5 + $0x84] sm:$0xf]
    %v156 = vld [vmem:[#allocation5 + $0x88] sm:$0xf]
    %v157 = vld [vmem:[#allocation5 + $0x8c] sm:$0xf]
    %v158 = vld [vmem:[#allocation5 + $0x90] sm:$0xf]
    %v159 = vld [vmem:[#allocation5 + $0x94] sm:$0xf]
    %v160 = vld [vmem:[#allocation5 + $0x98] sm:$0xf]
    %v161 = vld [vmem:[#allocation5 + $0x9c] sm:$0xf]
    %v162 = vld [vmem:[#allocation5 + $0xa0] sm:$0xf]
    %v163 = vld [vmem:[#allocation5 + $0xa4] sm:$0xf]
    %v164 = vld [vmem:[#allocation5 + $0xa8] sm:$0xf]
    %v165 = vld [vmem:[#allocation5 + $0xac] sm:$0xf]
    %v166 = vld [vmem:[#allocation5 + $0xb0] sm:$0xf]
    %v167 = vld [vmem:[#allocation5 + $0xb4] sm:$0xf]
    %v168 = vld [vmem:[#allocation5 + $0xb8] sm:$0xf]
    %v169 = vld [vmem:[#allocation5 + $0xbc] sm:$0xf]
    %v170 = vld [vmem:[#allocation5 + $0xc0] sm:$0xf]
    %v171 = vld [vmem:[#allocation5 + $0xc4] sm:$0xf]
    %v172 = vld [vmem:[#allocation5 + $0xc8] sm:$0xf]
    %v173 = vld [vmem:[#allocation5 + $0xcc] sm:$0xf]
    %v174 = vld [vmem:[#allocation5 + $0xd0] sm:$0xf]
    %v175 = vld [vmem:[#allocation5 + $0xd4] sm:$0xf]
    %v176 = vld [vmem:[#allocation5 + $0xd8] sm:$0xf]
    %v177 = vld [vmem:[#allocation5 + $0xdc] sm:$0xf]
    %v178 = vld [vmem:[#allocation5 + $0xe0] sm:$0xf]
    %v179 = vld [vmem:[#allocation5 + $0xe4] sm:$0xf]
    %v180 = vld [vmem:[#allocation5 + $0xe8] sm:$0xf]
    %v181 = vld [vmem:[#allocation5 + $0xec] sm:$0xf]
    %v182 = vld [vmem:[#allocation5 + $0xf0] sm:$0xf]
    %v183 = vld [vmem:[#allocation5 + $0xf4] sm:$0xf]
    %v184 = vld [vmem:[#allocation5 + $0xf8] sm:$0xf]
    %v185 = vld [vmem:[#allocation5 + $0xfc] sm:$0xf]
    %v186 = vld [vmem:[#allocation5 + $0x100] sm:$0xf]
    %v187 = vld [vmem:[#allocation5 + $0x104] sm:$0xf]
    %v188 = vld [vmem:[#allocation5 + $0x108] sm:$0xf]
    %v189 = vld [vmem:[#allocation5 + $0x10c] sm:$0xf]
    %v190 = vld [vmem:[#allocation5 + $0x110] sm:$0xf]
    %v191 = vld [vmem:[#allocation5 + $0x114] sm:$0xf]
    %v192 = vld [vmem:[#allocation5 + $0x118] sm:$0xf]
    %v193 = vld [vmem:[#allocation5 + $0x11c] sm:$0xf]
    %v194 = vld [vmem:[#allocation5 + $0x120] sm:$0xf]
    %v195 = vld [vmem:[#allocation5 + $0x124] sm:$0xf]
    %v196 = vld [vmem:[#allocation5 + $0x128] sm:$0xf]
    %v197 = vld [vmem:[#allocation5 + $0x12c] sm:$0xf]
    %v198 = vld [vmem:[#allocation5 + $0x130] sm:$0xf]
    %v199 = vld [vmem:[#allocation5 + $0x134] sm:$0xf]
    %v200 = vld [vmem:[#allocation5 + $0x138] sm:$0xf]
    %v201 = vld [vmem:[#allocation5 + $0x13c] sm:$0xf]
    %v202 = vld [vmem:[#allocation5 + $0x140] sm:$0xf]
    %v203 = vld [vmem:[#allocation5 + $0x144] sm:$0xf]
    %v204 = vld [vmem:[#allocation5 + $0x148] sm:$0xf]
    %v205 = vld [vmem:[#allocation5 + $0x14c] sm:$0xf]
    %v206 = vld [vmem:[#allocation5 + $0x150] sm:$0xf]
    %v207 = vld [vmem:[#allocation5 + $0x154] sm:$0xf]
    %v208 = vld [vmem:[#allocation5 + $0x158] sm:$0xf]
    %v209 = vld [vmem:[#allocation5 + $0x15c] sm:$0xf]
    %v210 = vld [vmem:[#allocation5 + $0x160] sm:$0xf]
    %v211 = vld [vmem:[#allocation5 + $0x164] sm:$0xf]
    %v212 = vld [vmem:[#allocation5 + $0x168] sm:$0xf]
    %v213 = vld [vmem:[#allocation5 + $0x16c] sm:$0xf]
    %v214 = vld [vmem:[#allocation5 + $0x170] sm:$0xf]
    %v215 = vld [vmem:[#allocation5 + $0x174] sm:$0xf]
    %v216 = vld [vmem:[#allocation5 + $0x178] sm:$0xf]
    %v217 = vld [vmem:[#allocation5 + $0x17c] sm:$0xf]
    %v218 = vld [vmem:[%s2] sm:$0x1]
    %v220 = vlaneseq
    %v221 = vshrl.u32 %v220, 7
    %v222 = vsub.s32 0, %v221
    %v223 = vrot.slane %v218, %v222
    %v321 = vunpack.c.l.b16 %v122
    %v322 = vunpack.c.l.b16 %v123
    %v323 = vunpack.c.l.b16 %v124
    %v324 = vunpack.c.l.b16 %v125
    %v325 = vunpack.c.l.b16 %v126
    %v326 = vunpack.c.l.b16 %v127
    %v327 = vunpack.c.l.b16 %v128
    %v328 = vunpack.c.l.b16 %v129
    %v329 = vunpack.c.l.b16 %v130
    %v330 = vunpack.c.l.b16 %v131
    %v331 = vunpack.c.l.b16 %v132
    %v332 = vunpack.c.l.b16 %v133
    %v333 = vunpack.c.l.b16 %v134
    %v334 = vunpack.c.l.b16 %v135
    %v335 = vunpack.c.l.b16 %v136
    %v336 = vunpack.c.l.b16 %v137
    %v337 = vunpack.c.l.b16 %v138
    %v338 = vunpack.c.l.b16 %v139
    %v339 = vunpack.c.l.b16 %v140
    %v340 = vunpack.c.l.b16 %v141
    %v341 = vunpack.c.l.b16 %v142
    %v342 = vunpack.c.l.b16 %v143
    %v343 = vunpack.c.l.b16 %v144
    %v344 = vunpack.c.l.b16 %v145
    %v345 = vunpack.c.l.b16 %v146
    %v346 = vunpack.c.l.b16 %v147
    %v347 = vunpack.c.l.b16 %v148
    %v348 = vunpack.c.l.b16 %v149
    %v349 = vunpack.c.l.b16 %v150
    %v350 = vunpack.c.l.b16 %v151
    %v351 = vunpack.c.l.b16 %v152
    %v352 = vunpack.c.l.b16 %v153
    %v353 = vunpack.c.l.b16 %v154
    %v354 = vunpack.c.l.b16 %v155
    %v355 = vunpack.c.l.b16 %v156
    %v356 = vunpack.c.l.b16 %v157
    %v357 = vunpack.c.l.b16 %v158
    %v358 = vunpack.c.l.b16 %v159
    %v359 = vunpack.c.l.b16 %v160
    %v360 = vunpack.c.l.b16 %v161
    %v361 = vunpack.c.l.b16 %v162
    %v362 = vunpack.c.l.b16 %v163
    %v363 = vunpack.c.l.b16 %v164
    %v364 = vunpack.c.l.b16 %v165
    %v365 = vunpack.c.l.b16 %v166
    %v366 = vunpack.c.l.b16 %v167
    %v367 = vunpack.c.l.b16 %v168
    %v368 = vunpack.c.l.b16 %v169
    %v369 = vunpack.c.l.b16 %v170
    %v370 = vunpack.c.l.b16 %v171
    %v371 = vunpack.c.l.b16 %v172
    %v372 = vunpack.c.l.b16 %v173
    %v373 = vunpack.c.l.b16 %v174
    %v374 = vunpack.c.l.b16 %v175
    %v375 = vunpack.c.l.b16 %v176
    %v376 = vunpack.c.l.b16 %v177
    %v377 = vunpack.c.l.b16 %v178
    %v378 = vunpack.c.l.b16 %v179
    %v379 = vunpack.c.l.b16 %v180
    %v380 = vunpack.c.l.b16 %v181
    %v381 = vunpack.c.l.b16 %v182
    %v382 = vunpack.c.l.b16 %v183
    %v383 = vunpack.c.l.b16 %v184
    %v384 = vunpack.c.l.b16 %v185
    %v385 = vunpack.c.l.b16 %v186
    %v386 = vunpack.c.l.b16 %v187
    %v387 = vunpack.c.l.b16 %v188
    %v388 = vunpack.c.l.b16 %v189
    %v389 = vunpack.c.l.b16 %v190
    %v390 = vunpack.c.l.b16 %v191
    %v391 = vunpack.c.l.b16 %v192
    %v392 = vunpack.c.l.b16 %v193
    %v393 = vunpack.c.l.b16 %v194
    %v394 = vunpack.c.l.b16 %v195
    %v395 = vunpack.c.l.b16 %v196
    %v396 = vunpack.c.l.b16 %v197
    %v397 = vunpack.c.l.b16 %v198
    %v398 = vunpack.c.l.b16 %v199
    %v399 = vunpack.c.l.b16 %v200
    %v400 = vunpack.c.l.b16 %v201
    %v401 = vunpack.c.l.b16 %v202
    %v402 = vunpack.c.l.b16 %v203
    %v403 = vunpack.c.l.b16 %v204
    %v404 = vunpack.c.l.b16 %v205
    %v405 = vunpack.c.l.b16 %v206
    %v406 = vunpack.c.l.b16 %v207
    %v407 = vunpack.c.l.b16 %v208
    %v408 = vunpack.c.l.b16 %v209
    %v409 = vunpack.c.l.b16 %v210
    %v410 = vunpack.c.l.b16 %v211
    %v411 = vunpack.c.l.b16 %v212
    %v412 = vunpack.c.l.b16 %v213
    %v413 = vunpack.c.l.b16 %v214
    %v414 = vunpack.c.l.b16 %v215
    %v415 = vunpack.c.l.b16 %v216
    %v416 = vunpack.c.l.b16 %v217
    %v417 = vpack.c.b16 %v322, %v321
    %v418 = vpack.c.b16 %v324, %v323
    %v419 = vpack.c.b16 %v326, %v325
    %v420 = vpack.c.b16 %v328, %v327
    %v421 = vpack.c.b16 %v330, %v329
    %v422 = vpack.c.b16 %v332, %v331
    %v423 = vpack.c.b16 %v334, %v333
    %v424 = vpack.c.b16 %v336, %v335
    %v425 = vpack.c.b16 %v338, %v337
    %v426 = vpack.c.b16 %v340, %v339
    %v427 = vpack.c.b16 %v342, %v341
    %v428 = vpack.c.b16 %v344, %v343
    %v429 = vpack.c.b16 %v346, %v345
    %v430 = vpack.c.b16 %v348, %v347
    %v431 = vpack.c.b16 %v350, %v349
    %v432 = vpack.c.b16 %v352, %v351
    %v433 = vpack.c.b16 %v354, %v353
    %v434 = vpack.c.b16 %v356, %v355
    %v435 = vpack.c.b16 %v358, %v357
    %v436 = vpack.c.b16 %v360, %v359
    %v437 = vpack.c.b16 %v362, %v361
    %v438 = vpack.c.b16 %v364, %v363
    %v439 = vpack.c.b16 %v366, %v365
    %v440 = vpack.c.b16 %v368, %v367
    %v441 = vpack.c.b16 %v370, %v369
    %v442 = vpack.c.b16 %v372, %v371
    %v443 = vpack.c.b16 %v374, %v373
    %v444 = vpack.c.b16 %v376, %v375
    %v445 = vpack.c.b16 %v378, %v377
    %v446 = vpack.c.b16 %v380, %v379
    %v447 = vpack.c.b16 %v382, %v381
    %v448 = vpack.c.b16 %v384, %v383
    %v449 = vpack.c.b16 %v386, %v385
    %v450 = vpack.c.b16 %v388, %v387
    %v451 = vpack.c.b16 %v390, %v389
    %v452 = vpack.c.b16 %v392, %v391
    %v453 = vpack.c.b16 %v394, %v393
    %v454 = vpack.c.b16 %v396, %v395
    %v455 = vpack.c.b16 %v398, %v397
    %v456 = vpack.c.b16 %v400, %v399
    %v457 = vpack.c.b16 %v402, %v401
    %v458 = vpack.c.b16 %v404, %v403
    %v459 = vpack.c.b16 %v406, %v405
    %v460 = vpack.c.b16 %v408, %v407
    %v461 = vpack.c.b16 %v410, %v409
    %v462 = vpack.c.b16 %v412, %v411
    %v463 = vpack.c.b16 %v414, %v413
    %v464 = vpack.c.b16 %v416, %v415
    %513 = vmatprep.subr.bf16.mxu0 0
    %514 = vmatpush1.bf16.msra.mxu0 %v417
    %515 = vmatprep.subr.bf16.mxu0 0
    %516 = vmatpush1.bf16.msra.mxu0 %v418
    %517 = vmatprep.subr.bf16.mxu0 0
    %518 = vmatpush1.bf16.msra.mxu0 %v419
    %519 = vmatprep.subr.bf16.mxu0 0
    %520 = vmatpush1.bf16.msra.mxu0 %v420
    %521 = vmatprep.subr.bf16.mxu0 0
    %522 = vmatpush1.bf16.msra.mxu0 %v421
    %523 = vmatprep.subr.bf16.mxu0 0
    %524 = vmatpush1.bf16.msra.mxu0 %v422
    %525 = vmatprep.subr.bf16.mxu0 0
    %526 = vmatpush1.bf16.msra.mxu0 %v423
    %527 = vmatprep.subr.bf16.mxu0 0
    %528 = vmatpush1.bf16.msra.mxu0 %v424
    %529 = vmatprep.subr.bf16.mxu0 0
    %530 = vmatpush1.bf16.msra.mxu0 %v425
    %531 = vmatprep.subr.bf16.mxu0 0
    %532 = vmatpush1.bf16.msra.mxu0 %v426
    %533 = vmatprep.subr.bf16.mxu0 0
    %534 = vmatpush1.bf16.msra.mxu0 %v427
    %535 = vmatprep.subr.bf16.mxu0 0
    %536 = vmatpush1.bf16.msra.mxu0 %v428
    %537 = vmatprep.subr.bf16.mxu0 0
    %538 = vmatpush1.bf16.msra.mxu0 %v429
    %539 = vmatprep.subr.bf16.mxu0 0
    %540 = vmatpush1.bf16.msra.mxu0 %v430
    %541 = vmatprep.subr.bf16.mxu0 0
    %542 = vmatpush1.bf16.msra.mxu0 %v431
    %543 = vmatprep.subr.bf16.mxu0 0
    %544 = vmatpush1.bf16.msra.mxu0 %v432
    %545 = vmatprep.mubr.bf16.mxu0 %v117
    %546 = vmatmul.mubr.bf16.gmra.mrb[0].mxu0 %v116
    %v547 = vpop.f32.mrb[0].mxu0
    %v548 = vadd.f32 %v223, %v547
    %v549 = vpop.f32.mrb[0].mxu0
    %v550 = vpop.f32.mrb[0].mxu0
    %v551 = vpop.f32.mrb[0].mxu0
    %552 = vdwg.mxu0
    %553 = vmatprep.subr.bf16.mxu0 0
    %554 = vmatpush1.bf16.msra.mxu0 %v433
    %555 = vmatprep.subr.bf16.mxu0 0
    %556 = vmatpush1.bf16.msra.mxu0 %v434
    %557 = vmatprep.subr.bf16.mxu0 0
    %558 = vmatpush1.bf16.msra.mxu0 %v435
    %559 = vmatprep.subr.bf16.mxu0 0
    %560 = vmatpush1.bf16.msra.mxu0 %v436
    %561 = vmatprep.subr.bf16.mxu0 0
    %562 = vmatpush1.bf16.msra.mxu0 %v437
    %563 = vmatprep.subr.bf16.mxu0 0
    %564 = vmatpush1.bf16.msra.mxu0 %v438
    %565 = vmatprep.subr.bf16.mxu0 0
    %566 = vmatpush1.bf16.msra.mxu0 %v439
    %567 = vmatprep.subr.bf16.mxu0 0
    %568 = vmatpush1.bf16.msra.mxu0 %v440
    %569 = vmatprep.subr.bf16.mxu0 0
    %570 = vmatpush1.bf16.msra.mxu0 %v441
    %571 = vmatprep.subr.bf16.mxu0 0
    %572 = vmatpush1.bf16.msra.mxu0 %v442
    %573 = vmatprep.subr.bf16.mxu0 0
    %574 = vmatpush1.bf16.msra.mxu0 %v443
    %575 = vmatprep.subr.bf16.mxu0 0
    %576 = vmatpush1.bf16.msra.mxu0 %v444
    %577 = vmatprep.subr.bf16.mxu0 0
    %578 = vmatpush1.bf16.msra.mxu0 %v445
    %579 = vmatprep.subr.bf16.mxu0 0
    %580 = vmatpush1.bf16.msra.mxu0 %v446
    %581 = vmatprep.subr.bf16.mxu0 0
    %582 = vmatpush1.bf16.msra.mxu0 %v447
    %583 = vmatprep.subr.bf16.mxu0 0
    %584 = vmatpush1.bf16.msra.mxu0 %v448
    %585 = vmatprep.mubr.bf16.mxu0 %v119
    %586 = vmatmul.mubr.bf16.gmra.mrb[0].mxu0 %v118
    %v587 = vpop.f32.mrb[0].mxu0
    %v588 = vadd.f32 %v548, %v587
    %v589 = vpop.f32.mrb[0].mxu0
    %v590 = vpop.f32.mrb[0].mxu0
    %v591 = vpop.f32.mrb[0].mxu0
    %592 = vdwg.mxu0
    %593 = vmatprep.subr.bf16.mxu0 0
    %594 = vmatpush1.bf16.msra.mxu0 %v449
    %595 = vmatprep.subr.bf16.mxu0 0
    %596 = vmatpush1.bf16.msra.mxu0 %v450
    %597 = vmatprep.subr.bf16.mxu0 0
    %598 = vmatpush1.bf16.msra.mxu0 %v451
    %599 = vmatprep.subr.bf16.mxu0 0
    %600 = vmatpush1.bf16.msra.mxu0 %v452
    %601 = vmatprep.subr.bf16.mxu0 0
    %602 = vmatpush1.bf16.msra.mxu0 %v453
    %603 = vmatprep.subr.bf16.mxu0 0
    %604 = vmatpush1.bf16.msra.mxu0 %v454
    %605 = vmatprep.subr.bf16.mxu0 0
    %606 = vmatpush1.bf16.msra.mxu0 %v455
    %607 = vmatprep.subr.bf16.mxu0 0
    %608 = vmatpush1.bf16.msra.mxu0 %v456
    %609 = vmatprep.subr.bf16.mxu0 0
    %610 = vmatpush1.bf16.msra.mxu0 %v457
    %611 = vmatprep.subr.bf16.mxu0 0
    %612 = vmatpush1.bf16.msra.mxu0 %v458
    %613 = vmatprep.subr.bf16.mxu0 0
    %614 = vmatpush1.bf16.msra.mxu0 %v459
    %615 = vmatprep.subr.bf16.mxu0 0
    %616 = vmatpush1.bf16.msra.mxu0 %v460
    %617 = vmatprep.subr.bf16.mxu0 0
    %618 = vmatpush1.bf16.msra.mxu0 %v461
    %619 = vmatprep.subr.bf16.mxu0 0
    %620 = vmatpush1.bf16.msra.mxu0 %v462
    %621 = vmatprep.subr.bf16.mxu0 0
    %622 = vmatpush1.bf16.msra.mxu0 %v463
    %623 = vmatprep.subr.bf16.mxu0 0
    %624 = vmatpush1.bf16.msra.mxu0 %v464
    %625 = vmatprep.mubr.bf16.mxu0 %v121
    %626 = vmatmul.mubr.bf16.gmra.mrb[0].mxu0 %v120
    %v627 = vpop.f32.mrb[0].mxu0
    %v628 = vadd.f32 %v588, %v627
    %v629 = vpop.f32.mrb[0].mxu0
    %v630 = vpop.f32.mrb[0].mxu0
    %v631 = vpop.f32.mrb[0].mxu0
    %632 = vdwg.mxu0
    %v633 = vmax.f32 %v628, 0.0
    %v634 = vpack.c.bf16 %v633, %v633
    %v635 = vld [vmem:[#allocation7] sm:$0xf]
    %v636 = vld [vmem:[#allocation7 + $0x4] sm:$0xf]
    %v637 = vld [vmem:[#allocation7 + $0x8] sm:$0xf]
    %v638 = vld [vmem:[#allocation7 + $0xc] sm:$0xf]
    %v639 = vld [vmem:[#allocation7 + $0x10] sm:$0xf]
    %v640 = vld [vmem:[#allocation7 + $0x14] sm:$0xf]
    %v641 = vld [vmem:[#allocation7 + $0x18] sm:$0xf]
    %v642 = vld [vmem:[#allocation7 + $0x1c] sm:$0xf]
    %v643 = vld [vmem:[#allocation7 + $0x20] sm:$0xf]
    %v644 = vld [vmem:[#allocation7 + $0x24] sm:$0xf]
    %v645 = vld [vmem:[#allocation7 + $0x28] sm:$0xf]
    %v646 = vld [vmem:[#allocation7 + $0x2c] sm:$0xf]
    %v647 = vld [vmem:[#allocation7 + $0x30] sm:$0xf]
    %v648 = vld [vmem:[#allocation7 + $0x34] sm:$0xf]
    %v649 = vld [vmem:[#allocation7 + $0x38] sm:$0xf]
    %v650 = vld [vmem:[#allocation7 + $0x3c] sm:$0xf]
    %v651 = vld [vmem:[%s4] sm:$0x1]
    %v653 = vlaneseq
    %v654 = vshrl.u32 %v653, 7
    %v655 = vsub.s32 0, %v654
    %v656 = vrot.slane %v651, %v655
    %v674 = vunpack.c.l.b16 %v635
    %v675 = vunpack.c.l.b16 %v636
    %v676 = vunpack.c.l.b16 %v637
    %v677 = vunpack.c.l.b16 %v638
    %v678 = vunpack.c.l.b16 %v639
    %v679 = vunpack.c.l.b16 %v640
    %v680 = vunpack.c.l.b16 %v641
    %v681 = vunpack.c.l.b16 %v642
    %v682 = vunpack.c.l.b16 %v643
    %v683 = vunpack.c.l.b16 %v644
    %v684 = vunpack.c.l.b16 %v645
    %v685 = vunpack.c.l.b16 %v646
    %v686 = vunpack.c.l.b16 %v647
    %v687 = vunpack.c.l.b16 %v648
    %v688 = vunpack.c.l.b16 %v649
    %v689 = vunpack.c.l.b16 %v650
    %v690 = vpack.c.b16 %v675, %v674
    %v691 = vpack.c.b16 %v677, %v676
    %v692 = vpack.c.b16 %v679, %v678
    %v693 = vpack.c.b16 %v681, %v680
    %v694 = vpack.c.b16 %v683, %v682
    %v695 = vpack.c.b16 %v685, %v684
    %v696 = vpack.c.b16 %v687, %v686
    %v697 = vpack.c.b16 %v689, %v688
    %706 = vmatprep.subr.bf16.mxu0 0
    %707 = vmatpush1.bf16.msra.mxu0 %v690
    %708 = vmatprep.subr.bf16.mxu0 0
    %709 = vmatpush1.bf16.msra.mxu0 %v691
    %710 = vmatprep.subr.bf16.mxu0 0
    %711 = vmatpush1.bf16.msra.mxu0 %v692
    %712 = vmatprep.subr.bf16.mxu0 0
    %713 = vmatpush1.bf16.msra.mxu0 %v693
    %714 = vmatprep.subr.bf16.mxu0 0
    %715 = vmatpush1.bf16.msra.mxu0 %v694
    %716 = vmatprep.subr.bf16.mxu0 0
    %717 = vmatpush1.bf16.msra.mxu0 %v695
    %718 = vmatprep.subr.bf16.mxu0 0
    %719 = vmatpush1.bf16.msra.mxu0 %v696
    %720 = vmatprep.subr.bf16.mxu0 0
    %721 = vmatpush1.bf16.msra.mxu0 %v697
    %722 = vmatprep.subr.bf16.mxu0 0
    %723 = vmatpush1.bf16.msra.mxu0 0
    %724 = vmatprep.subr.bf16.mxu0 0
    %725 = vmatpush1.bf16.msra.mxu0 0
    %726 = vmatprep.subr.bf16.mxu0 0
    %727 = vmatpush1.bf16.msra.mxu0 0
    %728 = vmatprep.subr.bf16.mxu0 0
    %729 = vmatpush1.bf16.msra.mxu0 0
    %730 = vmatprep.subr.bf16.mxu0 0
    %731 = vmatpush1.bf16.msra.mxu0 0
    %732 = vmatprep.subr.bf16.mxu0 0
    %733 = vmatpush1.bf16.msra.mxu0 0
    %734 = vmatprep.subr.bf16.mxu0 0
    %735 = vmatpush1.bf16.msra.mxu0 0
    %736 = vmatprep.subr.bf16.mxu0 0
    %737 = vmatpush1.bf16.msra.mxu0 0
    %738 = vmatprep.mubr.bf16.mxu0 0
    %739 = vmatmul.mubr.bf16.gmra.mrb[0].mxu0 %v634
    %v740 = vpop.f32.mrb[0].mxu0
    %v741 = vadd.f32 %v656, %v740
    %v742 = vpop.f32.mrb[0].mxu0
    %v743 = vpop.f32.mrb[0].mxu0
    %v744 = vpop.f32.mrb[0].mxu0
    %745 = vdwg.mxu0
    %v746 = vmax.f32 %v741, 0.0
    %v747 = vpack.c.bf16 %v746, %v746
    %v748 = vld [vmem:[#allocation8] sm:$0xf]
    %v749 = vld [vmem:[#allocation8 + $0x4] sm:$0xf]
    %v750 = vld [vmem:[#allocation8 + $0x8] sm:$0xf]
    %v751 = vld [vmem:[#allocation8 + $0xc] sm:$0xf]
    %v752 = vld [vmem:[#allocation8 + $0x10] sm:$0xf]
    %v753 = vld [vmem:[#allocation8 + $0x14] sm:$0xf]
    %v754 = vld [vmem:[#allocation8 + $0x18] sm:$0xf]
    %v755 = vld [vmem:[#allocation8 + $0x1c] sm:$0xf]
    %v756 = vld [vmem:[#allocation8 + $0x20] sm:$0xf]
    %v757 = vld [vmem:[#allocation8 + $0x24] sm:$0xf]
    %v758 = vld [vmem:[#allocation8 + $0x28] sm:$0xf]
    %v759 = vld [vmem:[#allocation8 + $0x2c] sm:$0xf]
    %v760 = vld [vmem:[#allocation8 + $0x30] sm:$0xf]
    %v761 = vld [vmem:[#allocation8 + $0x34] sm:$0xf]
    %v762 = vld [vmem:[#allocation8 + $0x38] sm:$0xf]
    %v763 = vld [vmem:[#allocation8 + $0x3c] sm:$0xf]
    %v764 = vld [vmem:[%s6] sm:$0x1]
    %v766 = vlaneseq
    %v767 = vshrl.u32 %v766, 7
    %v768 = vsub.s32 0, %v767
    %v769 = vrot.slane %v764, %v768
    %v787 = vunpack.c.l.b16 %v748
    %v788 = vunpack.c.l.b16 %v749
    %v789 = vunpack.c.l.b16 %v750
    %v790 = vunpack.c.l.b16 %v751
    %v791 = vunpack.c.l.b16 %v752
    %v792 = vunpack.c.l.b16 %v753
    %v793 = vunpack.c.l.b16 %v754
    %v794 = vunpack.c.l.b16 %v755
    %v795 = vunpack.c.l.b16 %v756
    %v796 = vunpack.c.l.b16 %v757
    %v797 = vunpack.c.l.b16 %v758
    %v798 = vunpack.c.l.b16 %v759
    %v799 = vunpack.c.l.b16 %v760
    %v800 = vunpack.c.l.b16 %v761
    %v801 = vunpack.c.l.b16 %v762
    %v802 = vunpack.c.l.b16 %v763
    %v803 = vpack.c.b16 %v788, %v787
    %v804 = vpack.c.b16 %v790, %v789
    %v805 = vpack.c.b16 %v792, %v791
    %v806 = vpack.c.b16 %v794, %v793
    %v807 = vpack.c.b16 %v796, %v795
    %v808 = vpack.c.b16 %v798, %v797
    %v809 = vpack.c.b16 %v800, %v799
    %v810 = vpack.c.b16 %v802, %v801
    %819 = vmatprep.subr.bf16.mxu0 0
    %820 = vmatpush1.bf16.msra.mxu0 %v803
    %821 = vmatprep.subr.bf16.mxu0 0
    %822 = vmatpush1.bf16.msra.mxu0 %v804
    %823 = vmatprep.subr.bf16.mxu0 0
    %824 = vmatpush1.bf16.msra.mxu0 %v805
    %825 = vmatprep.subr.bf16.mxu0 0
    %826 = vmatpush1.bf16.msra.mxu0 %v806
    %827 = vmatprep.subr.bf16.mxu0 0
    %828 = vmatpush1.bf16.msra.mxu0 %v807
    %829 = vmatprep.subr.bf16.mxu0 0
    %830 = vmatpush1.bf16.msra.mxu0 %v808
    %831 = vmatprep.subr.bf16.mxu0 0
    %832 = vmatpush1.bf16.msra.mxu0 %v809
    %833 = vmatprep.subr.bf16.mxu0 0
    %834 = vmatpush1.bf16.msra.mxu0 %v810
    %835 = vmatprep.subr.bf16.mxu0 0
    %836 = vmatpush1.bf16.msra.mxu0 0
    %837 = vmatprep.subr.bf16.mxu0 0
    %838 = vmatpush1.bf16.msra.mxu0 0
    %839 = vmatprep.subr.bf16.mxu0 0
    %840 = vmatpush1.bf16.msra.mxu0 0
    %841 = vmatprep.subr.bf16.mxu0 0
    %842 = vmatpush1.bf16.msra.mxu0 0
    %843 = vmatprep.subr.bf16.mxu0 0
    %844 = vmatpush1.bf16.msra.mxu0 0
    %845 = vmatprep.subr.bf16.mxu0 0
    %846 = vmatpush1.bf16.msra.mxu0 0
    %847 = vmatprep.subr.bf16.mxu0 0
    %848 = vmatpush1.bf16.msra.mxu0 0
    %849 = vmatprep.subr.bf16.mxu0 0
    %850 = vmatpush1.bf16.msra.mxu0 0
    %851 = vmatprep.mubr.bf16.mxu0 0
    %852 = vmatmul.mubr.bf16.gmra.mrb[0].mxu0 %v747
    %v853 = vpop.f32.mrb[0].mxu0
    %v854 = vadd.f32 %v769, %v853
    %v855 = vpop.f32.mrb[0].mxu0
    %v856 = vpop.f32.mrb[0].mxu0
    %v857 = vpop.f32.mrb[0].mxu0
    %858 = vdwg.mxu0
    %v859 = vpack.c.bf16 %v854, %v854
    %860 = vst [vmem:[#allocation10] sm:$0x1] %v859
    // Predicated region
    $region46: #{tpu_custom_call.1} parent=1 // pred_check
      _
    $region47: #{tpu_custom_call.1} parent=1 // pred_check_branch
      %862 = sbr.rel (0) target = $region49
    $region48: #{tpu_custom_call.1} parent=1 // pred_region
      %s864 = ssub.s32 16, 16
      %865 = vsyncadd [#allocation4], %s864
      %s867 = sshll.u32 [#allocation10], 4
      %s868 = int_to_ptr.vmem [resolvable:$true] %s867
      %870 = dma.vmem_to_hbm [thread:$0]  %s868, 16, %s7, [#allocation4]
    $region49: #{tpu_custom_call.1} parent=1 // pred_fallthru
      _
    // Predicated region
    $region50: #{tpu_custom_call.1} parent=1 // pred_check
      _
    $region51: #{tpu_custom_call.1} parent=1 // pred_check_branch
      %872 = sbr.rel (0) target = $region53
    $region52: #{tpu_custom_call.1} parent=1 // pred_region
      %873 = dma.done [#allocation4], 16
    $region53: #{tpu_custom_call.1} parent=1 // pred_fallthru
      _
    %874 = vsyncpa [#allocation3], 1
    %875 = vsyncpa [#allocation6], 1
    %876 = vsyncpa [#allocation9], 1
    %877 = vsyncpa [#allocation4], 1

</llo_original>
